<compile_context>
chip_gen: v5e
topology: v5e:2x2
jax: 0.10.0
libtpu: 0.0.40
codegen_flags: <defaults>
</compile_context>

<pallas_src>
import functools

import jax
import jax.numpy as jnp
from jax.experimental import pallas as pl
from jax.experimental.pallas import tpu as pltpu


def _block_kernel(x_ref, w_ref, mod_ref, o_ref, *, apply_scale):
    # x_ref:   (1, TH+2, W+2, Cin)  bf16  input row tile with 1-px halo
    # w_ref:   (3, 3*Cin, Cpad)     bf16  conv weight, per-dy, (dx, ci) flattened
    # mod_ref: (1, 2, Cpad)         f32   row0 = scale+1, row1 = bias*(scale+1)+shift
    # o_ref:   (1, TH*W, Cout)      bf16  unpadded output channels
    _, THp2, WP, Cin = x_ref.shape
    TH, W = THp2 - 2, WP - 2
    Cout = o_ref.shape[-1]
    Cpad = w_ref.shape[-1]

    xt = x_ref[0]                                           # (TH+2, W+2, Cin)

    # 3 accumulated MXU contractions (one per dy), K = 3*Cin, f32 accumulate.
    acc = jnp.zeros((TH * W, Cpad), jnp.float32)
    for dy in range(3):                                     # static unroll
        rows = xt[dy:dy + TH]                               # (TH, W+2, Cin)
        patch = jnp.concatenate(
            [rows[:, dx:dx + W, :].reshape(TH * W, Cin) for dx in range(3)],
            axis=-1)                                        # (TH*W, 3*Cin)
        acc = acc + jnp.dot(patch, w_ref[dy],
                            preferred_element_type=jnp.float32)

    add = mod_ref[0, 1:2, :]                                # (1, Cpad) f32
    if apply_scale:
        y = acc * mod_ref[0, 0:1, :] + add
    else:
        y = acc + add
    y = y * jax.nn.sigmoid(y)                               # SiLU (EUP + VPU)

    if Cout != Cpad:
        y = y[:, :Cout]                                     # drop lane padding
    o_ref[...] = y[None].astype(o_ref.dtype)


def _choose_tile_h(H, W, Cin, Cout, budget_bytes=8 << 20):
    """Largest row-tile height TH (divisor of H) whose working set fits the
    VMEM budget; prefer TH*W a multiple of 256 (512 on v5e) for full-width
    MXU passes and stores."""
    Cpad = -(-Cout // 128) * 128
    cands = []
    for th in range(1, H + 1):
        if H % th:
            continue
        if th != H and (th * W) % 8:
            continue
        in_b = 2 * (th + 2) * (W + 2) * max(Cin, 8) * 2          # 2x-buffered bf16
        out_b = 2 * th * W * max(Cout, 8) * 2                    # 2x-buffered bf16
        tmp_b = th * W * (3 * max(Cin, 8) * 2 + Cpad * 4)        # patch + f32 acc
        if in_b + out_b + tmp_b <= budget_bytes:
            cands.append(th)
    if not cands:
        return H
    pref = [t for t in cands if (t * W) % 256 == 0]
    return max(pref) if pref else max(cands)


@functools.partial(jax.jit, static_argnames=("tile_h",))
def block_forward(x_nchw, weight_oihw, bias, scale=None, shift=None, *, tile_h=None):
    """Pallas forward of Block. x_nchw: (N, Cin, H, W) -> (N, Cout, H, W)."""
    N, Cin, H, W = x_nchw.shape
    Cout = weight_oihw.shape[0]
    Cpad = -(-Cout // 128) * 128                            # lane-aligned compute width

    apply_scale = scale is not None
    if apply_scale:
        assert shift is not None, "scale_shift must provide both scale and shift"

    TH = tile_h if tile_h is not None else _choose_tile_h(H, W, Cin, Cout)
    assert H % TH == 0 and (TH == H or (TH * W) % 8 == 0), "bad tile_h"
    R = H // TH

    # ---- host glue (one fused pass): NCHW->NHWC, bf16 cast, halo pad, and the
    #      overlapped row-window gather feeding non-overlapping Pallas blocks.
    x_nhwc = jnp.transpose(x_nchw, (0, 2, 3, 1)).astype(jnp.bfloat16)
    x_pad = jnp.pad(x_nhwc, ((0, 0), (1, 1), (1, 1), (0, 0)))          # SAME pad
    row_idx = jnp.arange(R)[:, None] * TH + jnp.arange(TH + 2)[None, :]
    x_tiles = x_pad[:, row_idx].reshape(N * R, TH + 2, W + 2, Cin)     # bf16

    w_hwio = jnp.transpose(weight_oihw, (2, 3, 1, 0))                  # (3,3,Cin,Cout)
    w_hwio = jnp.pad(w_hwio, ((0, 0), (0, 0), (0, 0), (0, Cpad - Cout)))
    w3 = w_hwio.reshape(3, 3 * Cin, Cpad).astype(jnp.bfloat16)         # (3, 3*Cin, Cpad)

    bias_f = bias.astype(jnp.float32)
    if apply_scale:
        mul = scale.reshape(N, Cout).astype(jnp.float32) + 1.0
        add = bias_f[None, :] * mul + shift.reshape(N, Cout).astype(jnp.float32)
    else:
        mul = jnp.ones((N, Cout), jnp.float32)              # unused (kernel skips mul)
        add = jnp.broadcast_to(bias_f[None, :], (N, Cout))
    mod = jnp.stack([mul, add], axis=1)                                # (N, 2, Cout)
    mod = jnp.pad(mod, ((0, 0), (0, 0), (0, Cpad - Cout)))             # (N, 2, Cpad)

    # VMEM budget: double-buffered in/out blocks + in-kernel temps, with headroom.
    in_blk = (TH + 2) * (W + 2) * max(Cin, 8) * 2
    out_blk = TH * W * max(Cout, 8) * 2
    tmp_blk = TH * W * (3 * max(Cin, 8) * 2 + Cpad * 4)
    vmem_limit = int(min(max(4 * (2 * in_blk + 2 * out_blk + tmp_blk), 16 << 20), 64 << 20))

    out_bytes = N * H * W * Cout * 2
    cost = pl.CostEstimate(
        flops=2 * 9 * Cin * Cout * H * W * N,
        transcendentals=N * H * W * Cout,
        bytes_accessed=int(x_tiles.size * 2 + w3.size * 2 + mod.size * 4 + out_bytes))

    out = pl.pallas_call(
        functools.partial(_block_kernel, apply_scale=apply_scale),
        out_shape=jax.ShapeDtypeStruct((N, H * W, Cout), jnp.bfloat16),
        grid_spec=pltpu.PrefetchScalarGridSpec(
            num_scalar_prefetch=0,
            grid=(N, R),
            in_specs=[
                pl.BlockSpec((1, TH + 2, W + 2, Cin),
                             lambda n, r: (n * R + r, 0, 0, 0)),
                pl.BlockSpec((3, 3 * Cin, Cpad), lambda n, r: (0, 0, 0)),   # resident
                pl.BlockSpec((1, 2, Cpad), lambda n, r: (n, 0, 0)),         # per-batch
            ],
            out_specs=pl.BlockSpec((1, TH * W, Cout), lambda n, r: (n, r, 0)),
        ),
        compiler_params=pltpu.CompilerParams(
            dimension_semantics=("parallel", "parallel"),
            vmem_limit_bytes=vmem_limit),
        cost_estimate=cost,
    )(x_tiles, w3, mod)

    out = out.reshape(N, H, W, Cout)                                   # NHWC bf16
    return jnp.transpose(out, (0, 3, 1, 2)).astype(x_nchw.dtype)       # back to NCHW


def _reference(x_nchw, weight_oihw, bias, scale, shift):
    y = jax.lax.conv_general_dilated(
        x_nchw.astype(jnp.float32), weight_oihw.astype(jnp.float32),
        window_strides=(1, 1), padding="SAME",
        dimension_numbers=("NCHW", "OIHW", "NCHW"))
    y = y + bias.astype(jnp.float32)[None, :, None, None]
    y = y * (scale.astype(jnp.float32)[:, :, None, None] + 1.0) \
        + shift.astype(jnp.float32)[:, :, None, None]
    return y * jax.nn.sigmoid(y)


if __name__ == "__main__":
    key = jax.random.PRNGKey(0)
    k_x, k_w, k_b, k_sc, k_sh = jax.random.split(key, 5)

    N, Cin, Cout, H, W = 2, 4, 8, 16, 16

    x = jax.random.normal(k_x, (N, Cin, H, W), jnp.float32)
    # Synthetic parameters for proj = Conv2d(Cin, Cout, 3, 1, 1)
    weight = jax.random.normal(k_w, (Cout, Cin, 3, 3), jnp.float32) * 0.1
    bias = jax.random.normal(k_b, (Cout,), jnp.float32) * 0.1
    # scale_shift (as produced by a time-embedding MLP): per-batch, per-channel
    scale = jax.random.normal(k_sc, (N, Cout), jnp.float32) * 0.1
    shift = jax.random.normal(k_sh, (N, Cout), jnp.float32) * 0.1

    # bf16 matmul operands -> loosen tolerance vs the f32 reference.
    ATOL = RTOL = 3e-2

    # With scale_shift, explicit tile_h=8 -> 2 row tiles per image (exercises
    # the halo'd row-tiling path).
    out = block_forward(x, weight, bias, scale, shift, tile_h=8)
    out = jax.block_until_ready(out)
    ref = _reference(x, weight, bias, scale, shift)
    assert out.shape == (N, Cout, H, W)
    assert jnp.allclose(out, ref, atol=ATOL, rtol=RTOL), \
        f"max abs err = {jnp.max(jnp.abs(out - ref))}"

    # Without scale_shift (scale_shift=None path), auto-chosen tile height.
    out2 = block_forward(x, weight, bias)
    out2 = jax.block_until_ready(out2)
    ref2 = _reference(x, weight, bias,
                      jnp.zeros((N, Cout), jnp.float32),
                      jnp.zeros((N, Cout), jnp.float32))
    assert jnp.allclose(out2, ref2, atol=ATOL, rtol=RTOL), \
        f"max abs err = {jnp.max(jnp.abs(out2 - ref2))}"

    print("KERNEL_OK")
</pallas_src>

<mosaic_0001>
module attributes {stable_mosaic.version = 11 : i64} {
  func.func @_block_kernel(%arg0: i32, %arg1: i32, %arg2: memref<1x10x18x4xbf16, #tpu.memory_space<vmem>>, %arg3: memref<3x12x128xbf16, #tpu.memory_space<vmem>>, %arg4: memref<1x2x128xf32, #tpu.memory_space<vmem>>, %arg5: memref<1x128x8xbf16, #tpu.memory_space<vmem>>) attributes {dimension_semantics = [#tpu.dimension_semantics<parallel>, #tpu.dimension_semantics<parallel>], iteration_bounds = array<i64: 2, 2>, scalar_prefetch = 0 : i64, scratch_operands = 0 : i64, tpu.core_type = #tpu.core_type<tc>, window_params = [{transform_indices = @transform_0, window_bounds = array<i64: 1, 10, 18, 4>}, {pipeline_mode = #tpu.pipeline_mode<synchronous>, transform_indices = @transform_1, window_bounds = array<i64: 3, 12, 128>}, {transform_indices = @transform_2, window_bounds = array<i64: 1, 2, 128>}, {transform_indices = @transform_3, window_bounds = array<i64: 1, 128, 8>}]} {
    %c0 = arith.constant 0 : index
    %c0_0 = arith.constant 0 : index
    %c0_1 = arith.constant 0 : index
    %c0_2 = arith.constant 0 : index
    %0 = vector.load %arg2[%c0, %c0_0, %c0_1, %c0_2] : memref<1x10x18x4xbf16, #tpu.memory_space<vmem>>, vector<1x10x18x4xbf16>
    %1 = vector.shape_cast %0 : vector<1x10x18x4xbf16> to vector<10x18x4xbf16>
    %cst = arith.constant 0.000000e+00 : f32
    %2 = vector.broadcast %cst : f32 to vector<128x128xf32>
    %3 = vector.extract_strided_slice %1 {offsets = [0, 0, 0], sizes = [8, 18, 4], strides = [1, 1, 1]} : vector<10x18x4xbf16> to vector<8x18x4xbf16>
    %4 = vector.extract_strided_slice %3 {offsets = [0, 0, 0], sizes = [8, 16, 4], strides = [1, 1, 1]} : vector<8x18x4xbf16> to vector<8x16x4xbf16>
    %5 = vector.shape_cast %4 : vector<8x16x4xbf16> to vector<128x4xbf16>
    %6 = vector.extract_strided_slice %3 {offsets = [0, 1, 0], sizes = [8, 16, 4], strides = [1, 1, 1]} : vector<8x18x4xbf16> to vector<8x16x4xbf16>
    %7 = vector.shape_cast %6 : vector<8x16x4xbf16> to vector<128x4xbf16>
    %8 = vector.extract_strided_slice %3 {offsets = [0, 2, 0], sizes = [8, 16, 4], strides = [1, 1, 1]} : vector<8x18x4xbf16> to vector<8x16x4xbf16>
    %9 = vector.shape_cast %8 : vector<8x16x4xbf16> to vector<128x4xbf16>
    %10 = tpu.concatenate %5, %7, %9 in 1 : vector<128x4xbf16>, vector<128x4xbf16>, vector<128x4xbf16> -> vector<128x12xbf16>
    %c0_3 = arith.constant 0 : index
    %c0_4 = arith.constant 0 : index
    %c0_5 = arith.constant 0 : index
    %11 = vector.load %arg3[%c0_3, %c0_4, %c0_5] : memref<3x12x128xbf16, #tpu.memory_space<vmem>>, vector<1x12x128xbf16>
    %12 = vector.shape_cast %11 : vector<1x12x128xbf16> to vector<12x128xbf16>
    %cst_6 = arith.constant dense<0.000000e+00> : vector<128x128xf32>
    %13 = tpu.matmul %10, %12, %cst_6 {dimension_numbers = #tpu.dot_dimension_numbers<[1], [0], [0], [1], [0, 0, 1, 1], [], []>} : vector<128x12xbf16>, vector<12x128xbf16>, vector<128x128xf32> -> vector<128x128xf32>
    %14 = arith.addf %2, %13 : vector<128x128xf32>
    %15 = vector.extract_strided_slice %1 {offsets = [1, 0, 0], sizes = [8, 18, 4], strides = [1, 1, 1]} : vector<10x18x4xbf16> to vector<8x18x4xbf16>
    %16 = vector.extract_strided_slice %15 {offsets = [0, 0, 0], sizes = [8, 16, 4], strides = [1, 1, 1]} : vector<8x18x4xbf16> to vector<8x16x4xbf16>
    %17 = vector.shape_cast %16 : vector<8x16x4xbf16> to vector<128x4xbf16>
    %18 = vector.extract_strided_slice %15 {offsets = [0, 1, 0], sizes = [8, 16, 4], strides = [1, 1, 1]} : vector<8x18x4xbf16> to vector<8x16x4xbf16>
    %19 = vector.shape_cast %18 : vector<8x16x4xbf16> to vector<128x4xbf16>
    %20 = vector.extract_strided_slice %15 {offsets = [0, 2, 0], sizes = [8, 16, 4], strides = [1, 1, 1]} : vector<8x18x4xbf16> to vector<8x16x4xbf16>
    %21 = vector.shape_cast %20 : vector<8x16x4xbf16> to vector<128x4xbf16>
    %22 = tpu.concatenate %17, %19, %21 in 1 : vector<128x4xbf16>, vector<128x4xbf16>, vector<128x4xbf16> -> vector<128x12xbf16>
    %c1 = arith.constant 1 : index
    %c0_7 = arith.constant 0 : index
    %c0_8 = arith.constant 0 : index
    %23 = vector.load %arg3[%c1, %c0_7, %c0_8] : memref<3x12x128xbf16, #tpu.memory_space<vmem>>, vector<1x12x128xbf16>
    %24 = vector.shape_cast %23 : vector<1x12x128xbf16> to vector<12x128xbf16>
    %cst_9 = arith.constant dense<0.000000e+00> : vector<128x128xf32>
    %25 = tpu.matmul %22, %24, %cst_9 {dimension_numbers = #tpu.dot_dimension_numbers<[1], [0], [0], [1], [0, 0, 1, 1], [], []>} : vector<128x12xbf16>, vector<12x128xbf16>, vector<128x128xf32> -> vector<128x128xf32>
    %26 = arith.addf %14, %25 : vector<128x128xf32>
    %27 = vector.extract_strided_slice %1 {offsets = [2, 0, 0], sizes = [8, 18, 4], strides = [1, 1, 1]} : vector<10x18x4xbf16> to vector<8x18x4xbf16>
    %28 = vector.extract_strided_slice %27 {offsets = [0, 0, 0], sizes = [8, 16, 4], strides = [1, 1, 1]} : vector<8x18x4xbf16> to vector<8x16x4xbf16>
    %29 = vector.shape_cast %28 : vector<8x16x4xbf16> to vector<128x4xbf16>
    %30 = vector.extract_strided_slice %27 {offsets = [0, 1, 0], sizes = [8, 16, 4], strides = [1, 1, 1]} : vector<8x18x4xbf16> to vector<8x16x4xbf16>
    %31 = vector.shape_cast %30 : vector<8x16x4xbf16> to vector<128x4xbf16>
    %32 = vector.extract_strided_slice %27 {offsets = [0, 2, 0], sizes = [8, 16, 4], strides = [1, 1, 1]} : vector<8x18x4xbf16> to vector<8x16x4xbf16>
    %33 = vector.shape_cast %32 : vector<8x16x4xbf16> to vector<128x4xbf16>
    %34 = tpu.concatenate %29, %31, %33 in 1 : vector<128x4xbf16>, vector<128x4xbf16>, vector<128x4xbf16> -> vector<128x12xbf16>
    %c2 = arith.constant 2 : index
    %c0_10 = arith.constant 0 : index
    %c0_11 = arith.constant 0 : index
    %35 = vector.load %arg3[%c2, %c0_10, %c0_11] : memref<3x12x128xbf16, #tpu.memory_space<vmem>>, vector<1x12x128xbf16>
    %36 = vector.shape_cast %35 : vector<1x12x128xbf16> to vector<12x128xbf16>
    %cst_12 = arith.constant dense<0.000000e+00> : vector<128x128xf32>
    %37 = tpu.matmul %34, %36, %cst_12 {dimension_numbers = #tpu.dot_dimension_numbers<[1], [0], [0], [1], [0, 0, 1, 1], [], []>} : vector<128x12xbf16>, vector<12x128xbf16>, vector<128x128xf32> -> vector<128x128xf32>
    %38 = arith.addf %26, %37 : vector<128x128xf32>
    %c0_13 = arith.constant 0 : index
    %c1_14 = arith.constant 1 : index
    %c0_15 = arith.constant 0 : index
    %39 = vector.load %arg4[%c0_13, %c1_14, %c0_15] : memref<1x2x128xf32, #tpu.memory_space<vmem>>, vector<1x1x128xf32>
    %40 = vector.shape_cast %39 : vector<1x1x128xf32> to vector<1x128xf32>
    %c0_16 = arith.constant 0 : index
    %c0_17 = arith.constant 0 : index
    %c0_18 = arith.constant 0 : index
    %41 = vector.load %arg4[%c0_16, %c0_17, %c0_18] : memref<1x2x128xf32, #tpu.memory_space<vmem>>, vector<1x1x128xf32>
    %42 = vector.shape_cast %41 : vector<1x1x128xf32> to vector<1x128xf32>
    %43 = vector.broadcast %42 : vector<1x128xf32> to vector<128x128xf32>
    %44 = arith.mulf %38, %43 : vector<128x128xf32>
    %45 = vector.broadcast %40 : vector<1x128xf32> to vector<128x128xf32>
    %46 = arith.addf %44, %45 : vector<128x128xf32>
    %47 = arith.negf %46 : vector<128x128xf32>
    %48 = math.exp %47 : vector<128x128xf32>
    %cst_19 = arith.constant 1.000000e+00 : f32
    %49 = vector.broadcast %cst_19 : f32 to vector<128x128xf32>
    %50 = arith.addf %49, %48 : vector<128x128xf32>
    %51 = arith.divf %49, %50 : vector<128x128xf32>
    %52 = arith.mulf %46, %51 : vector<128x128xf32>
    %53 = vector.extract_strided_slice %52 {offsets = [0, 0], sizes = [128, 8], strides = [1, 1]} : vector<128x128xf32> to vector<128x8xf32>
    %54 = vector.shape_cast %53 : vector<128x8xf32> to vector<1x128x8xf32>
    %55 = arith.truncf %54 : vector<1x128x8xf32> to vector<1x128x8xbf16>
    %c0_20 = arith.constant 0 : index
    %c0_21 = arith.constant 0 : index
    %c0_22 = arith.constant 0 : index
    %56 = vector.load %arg5[%c0_20, %c0_21, %c0_22] : memref<1x128x8xbf16, #tpu.memory_space<vmem>>, vector<1x128x8xbf16>
    tpu.vector_store %arg5[%c0_20, %c0_21, %c0_22], %55 {strides = array<i32>} : memref<1x128x8xbf16, #tpu.memory_space<vmem>>, vector<1x128x8xbf16>,
    return
  }
  func.func @transform_0(%arg0: i32, %arg1: i32) -> (i32, i32, i32, i32) {
    %c2_i32 = arith.constant 2 : i32
    %0 = arith.muli %arg0, %c2_i32 : i32
    %1 = arith.addi %0, %arg1 : i32
    %c0_i32 = arith.constant 0 : i32
    %c0_i32_0 = arith.constant 0 : i32
    %c0_i32_1 = arith.constant 0 : i32
    %c0_i32_2 = arith.constant 0 : i32
    return %1, %c0_i32, %c0_i32_0, %c0_i32_1 : i32, i32, i32, i32
  }
  func.func @transform_1(%arg0: i32, %arg1: i32) -> (i32, i32, i32) {
    %c0_i32 = arith.constant 0 : i32
    %c0_i32_0 = arith.constant 0 : i32
    %c0_i32_1 = arith.constant 0 : i32
    %c0_i32_2 = arith.constant 0 : i32
    return %c0_i32, %c0_i32_0, %c0_i32_1 : i32, i32, i32
  }
  func.func @transform_2(%arg0: i32, %arg1: i32) -> (i32, i32, i32) {
    %c0_i32 = arith.constant 0 : i32
    %c0_i32_0 = arith.constant 0 : i32
    %c0_i32_1 = arith.constant 0 : i32
    return %arg0, %c0_i32, %c0_i32_0 : i32, i32, i32
  }
  func.func @transform_3(%arg0: i32, %arg1: i32) -> (i32, i32, i32) {
    %c0_i32 = arith.constant 0 : i32
    %c0_i32_0 = arith.constant 0 : i32
    return %arg0, %arg1, %c0_i32 : i32, i32, i32
  }
}

</mosaic_0001>

<llo_original>
// kernel: block_forward.1
$region0: #{block_forward.1}
  #allocation0 [shape = 'u32[]', space=smem, size = 0x4, offset = 0x4, fixed_abs, tag = 'smem constant byte address 0x4 - core index']
  #allocation1 [shape = 'u32[72,128]{1,0:T(1,128)}', space=vmem, size = 0x9000, scoped, tag = 'internal scratch']
  %s0 = inlined_call_operand.vmem [shape: bf16[4,10,18,4], index: 0, kind: input, shape index: {}]
  %s1 = inlined_call_operand.vmem [shape: bf16[3,12,128], index: 1, kind: input, shape index: {}]
  %s2 = inlined_call_operand.vmem [shape: f32[2,2,128], index: 2, kind: input, shape index: {}]
  %s3 = inlined_call_operand.vmem [shape: bf16[2,256,8], index: 3, kind: output, shape index: {}]
  %s4 = sld [smem:[#allocation0]]
  $region45: #{block_forward.1} parent=0
    _
  %s6 = ssub.s32 1, %s4
  %s7 = scalar_select 0, %s6, %s4
  loop: start=0, step=1, limit=6
  $region2: #{block_forward.1} parent=0 // loop_pre_header
    _
  $region3: #{block_forward.1} parent=0 // loop_header
    %s9 = sphi 0, %s13
    %p10 = scmp.ge.s32.totalorder %s9, 6
    %s16 = sphi 0, %s28
    %s17 = sphi 0, %s24
    %s18 = sphi 0, %s16
    %s19 = sphi 0, %s17
    %s20 = sphi 0, %s18
    %s21 = sphi 0, %s19
    %s35 = sphi 0, %s37
    %s38 = sphi 0, %s35
    %s39 = sphi 0, %s38
    %s55 = sphi 0, %s39
    %s59 = sphi 0, %s59
    %s61 = sphi 0, %s59
    %s62 = sphi 0, %s61
    %s76 = sphi 0, %s62
    %s82 = sphi 0, %s84
    %s85 = sphi 0, %s82
    %s86 = sphi 0, %s85
    %s102 = sphi 0, %s86
    %s110 = sphi 0, %s112
    %s113 = sphi 0, %s110
    %s114 = sphi 0, %s113
    %s130 = sphi 0, %s114
  $region4: #{block_forward.1} parent=0 // loop_header_branch
    %12 = sbr.rel (%p10) target = $region8
  $region5: #{block_forward.1} parent=0 // loop_body
    %s14 = ssub.s32 %s9, 1
    %s15 = ssub.s32 %s9, 2
    %s22 = sadd.s32 1, %s17
    %p23 = scmp.ge.s32.totalorder %s22, 2
    %s24 = scalar_select %p23, 0, %s22
    %s25 = sadd.s32 1, %s16
    %s26 = scalar_select %p23, %s25, %s16
    %p27 = scmp.ge.s32.totalorder %s26, 2
    %s28 = scalar_select %p27, 0, %s26
    %s29 = smul.u32 %s16, 2
    %s30 = sadd.s32 %s29, %s17
    %s31 = smul.u32 %s28, 2
    %s32 = sadd.s32 %s31, %s24
    %s33 = ssub.s32 %s30, %s32
    %p34 = scmp.eq.s32.totalorder %s33, 0
    %s36 = sadd.s32 %s35, 1
    %s37 = scalar_select %p34, %s35, %s36
    %p40 = pneg %p34
    %p41 = scmp.eq.s32.totalorder %s9, 3
    %p42 = por %p40, %p41
    %p43 = scmp.ne.s32.totalorder %s35, %s38
    %p44 = scmp.eq.s32.totalorder %s9, 0
    %p45 = por %p43, %p44
    %p46 = scmp.ne.s32.totalorder %s35, %s38
    %p47 = scmp.eq.s32.totalorder %s14, 3
    %p48 = por %p46, %p47
    %p49 = scmp.ne.s32.totalorder %s38, %s39
    %p50 = scmp.eq.s32.totalorder %s14, 0
    %p51 = por %p49, %p50
    %p52 = scmp.ne.s32.totalorder %s38, %s39
    %p53 = scmp.eq.s32.totalorder %s15, 3
    %p54 = por %p52, %p53
    %p56 = scmp.ne.s32.totalorder %s39, %s55
    %p57 = scmp.eq.s32.totalorder %s15, 0
    %p58 = por %p56, %p57
    %s60 = sadd.s32 %s59, 1
    %p63 = scmp.eq.s32.totalorder %s9, 3
    %p64 = scmp.ne.s32.totalorder %s59, %s61
    %p65 = scmp.eq.s32.totalorder %s9, 0
    %p66 = por %p64, %p65
    %p67 = scmp.ne.s32.totalorder %s59, %s61
    %p68 = scmp.eq.s32.totalorder %s14, 3
    %p69 = por %p67, %p68
    %p70 = scmp.ne.s32.totalorder %s61, %s62
    %p71 = scmp.eq.s32.totalorder %s14, 0
    %p72 = por %p70, %p71
    %p73 = scmp.ne.s32.totalorder %s61, %s62
    %p74 = scmp.eq.s32.totalorder %s15, 3
    %p75 = por %p73, %p74
    %p77 = scmp.ne.s32.totalorder %s62, %s76
    %p78 = scmp.eq.s32.totalorder %s15, 0
    %p79 = por %p77, %p78
    %s80 = ssub.s32 %s16, %s28
    %p81 = scmp.eq.s32.totalorder %s80, 0
    %s83 = sadd.s32 %s82, 1
    %s84 = scalar_select %p81, %s82, %s83
    %p87 = pneg %p81
    %p88 = scmp.eq.s32.totalorder %s9, 3
    %p89 = por %p87, %p88
    %p90 = scmp.ne.s32.totalorder %s82, %s85
    %p91 = scmp.eq.s32.totalorder %s9, 0
    %p92 = por %p90, %p91
    %p93 = scmp.ne.s32.totalorder %s82, %s85
    %p94 = scmp.eq.s32.totalorder %s14, 3
    %p95 = por %p93, %p94
    %p96 = scmp.ne.s32.totalorder %s85, %s86
    %p97 = scmp.eq.s32.totalorder %s14, 0
    %p98 = por %p96, %p97
    %p99 = scmp.ne.s32.totalorder %s85, %s86
    %p100 = scmp.eq.s32.totalorder %s15, 3
    %p101 = por %p99, %p100
    %p103 = scmp.ne.s32.totalorder %s86, %s102
    %p104 = scmp.eq.s32.totalorder %s15, 0
    %p105 = por %p103, %p104
    %s106 = ssub.s32 %s16, %s28
    %s107 = ssub.s32 %s17, %s24
    %s108 = sor.u32 %s106, %s107
    %p109 = scmp.eq.s32.totalorder %s108, 0
    %s111 = sadd.s32 %s110, 1
    %s112 = scalar_select %p109, %s110, %s111
    %p115 = pneg %p109
    %p116 = scmp.eq.s32.totalorder %s9, 3
    %p117 = por %p115, %p116
    %p118 = scmp.ne.s32.totalorder %s110, %s113
    %p119 = scmp.eq.s32.totalorder %s9, 0
    %p120 = por %p118, %p119
    %p121 = scmp.ne.s32.totalorder %s110, %s113
    %p122 = scmp.eq.s32.totalorder %s14, 3
    %p123 = por %p121, %p122
    %p124 = scmp.ne.s32.totalorder %s113, %s114
    %p125 = scmp.eq.s32.totalorder %s14, 0
    %p126 = por %p124, %p125
    %p127 = scmp.ne.s32.totalorder %s113, %s114
    %p128 = scmp.eq.s32.totalorder %s15, 3
    %p129 = por %p127, %p128
    %p131 = scmp.ne.s32.totalorder %s114, %s130
    %p132 = scmp.eq.s32.totalorder %s15, 0
    %p133 = por %p131, %p132
    %p134 = scmp.le.s32.totalorder 1, %s9
    %p135 = scmp.lt.s32.totalorder %s9, 5
    %p136 = pnand %p134, %p135
    %p137 = pneg %p136
    // Predicated region
    $region9: #{block_forward.1} parent=5 // pred_check
      _
    $region10: #{block_forward.1} parent=5 // pred_check_branch
      %139 = sbr.rel (%p136) target = $region12
    $region11: #{block_forward.1} parent=5 // pred_region
      %s140 = ssub.s32 %s9, 1
      // Predicated region
      $region13: #{block_forward.1} parent=11 // pred_check
        %p141 = pneg %p72
      $region14: #{block_forward.1} parent=11 // pred_check_branch
        %143 = sbr.rel (%p141) target = $region16
      $region15: #{block_forward.1} parent=11 // pred_region
        _
      $region16: #{block_forward.1} parent=11 // pred_fallthru
        _
    $region12: #{block_forward.1} parent=5 // pred_fallthru
      _
    %p144 = scmp.lt.s32.totalorder %s9, 4
    // Predicated region
    $region17: #{block_forward.1} parent=5 // pred_check
      %p145 = pneg %p144
    $region18: #{block_forward.1} parent=5 // pred_check_branch
      %147 = sbr.rel (%p145) target = $region20
    $region19: #{block_forward.1} parent=5 // pred_region
      // Predicated region
      $region21: #{block_forward.1} parent=19 // pred_check
        %p148 = pneg %p45
      $region22: #{block_forward.1} parent=19 // pred_check_branch
        %150 = sbr.rel (%p148) target = $region24
      $region23: #{block_forward.1} parent=19 // pred_region
        %s151 = smul.u32 %s16, 2
        %s152 = sadd.s32 %s151, %s17
        %p153 = scmp.lt.s32.totalorder %s152, 3
        %s154 = scalar_select %p153, %s152, 3
        %s155 = smul.addr %s154, 30
        %s156 = smul.addr %s155, 4
        %s157 = scalar_lea.vmem %s0, %s156
        %s158 = smul.u32 %s16, 2
        %s159 = sadd.s32 %s158, %s17
      $region24: #{block_forward.1} parent=19 // pred_fallthru
        _
      // Predicated region
      $region25: #{block_forward.1} parent=19 // pred_check
        %p160 = pneg %p92
      $region26: #{block_forward.1} parent=19 // pred_check_branch
        %162 = sbr.rel (%p160) target = $region28
      $region27: #{block_forward.1} parent=19 // pred_region
        %p163 = scmp.lt.s32.totalorder %s16, 1
        %s164 = scalar_select %p163, %s16, 1
        %s165 = smul.addr %s164, 2
        %s166 = scalar_lea.vmem %s2, %s165
      $region28: #{block_forward.1} parent=19 // pred_fallthru
        _
    $region20: #{block_forward.1} parent=5 // pred_fallthru
      _
    %p167 = scmp.le.s32.totalorder 1, %s9
    %p168 = scmp.lt.s32.totalorder %s9, 5
    %p169 = pnand %p167, %p168
    %p170 = pneg %p169
    // Predicated region
    $region29: #{block_forward.1} parent=5 // pred_check
      _
    $region30: #{block_forward.1} parent=5 // pred_check_branch
      %172 = sbr.rel (%p169) target = $region32
    $region31: #{block_forward.1} parent=5 // pred_region
      %s173 = ssub.s32 %s9, 1
      %s174 = smul.u32 %s18, 2
      %s175 = sadd.s32 %s174, %s19
      %p176 = scmp.lt.s32.totalorder %s175, 3
      %s177 = scalar_select %p176, %s175, 3
      %s178 = smul.addr %s177, 30
      %s179 = smul.addr %s178, 4
      %s180 = scalar_lea.vmem %s0, %s179
      %p181 = pneg %p51
      %p182 = pneg %p48
      %p183 = pneg %p72
      %p184 = pneg %p69
      %p185 = scmp.lt.s32.totalorder %s18, 1
      %s186 = scalar_select %p185, %s18, 1
      %s187 = smul.addr %s186, 2
      %s188 = scalar_lea.vmem %s2, %s187
      %p189 = pneg %p98
      %p190 = pneg %p95
      %p191 = pneg %p126
      %p192 = pneg %p123
      %s193 = smul.u32 16, %s19
      %p194 = scmp.lt.s32.totalorder %s18, 1
      %s195 = scalar_select %p194, %s18, 1
      %p196 = scmp.lt.s32.totalorder %s193, 31
      %s197 = scalar_select %p196, %s193, 31
      %s198 = smul.addr %s195, 32
      %s199 = sadd.s32 %s197, %s198
      %s200 = smul.addr %s199, 4
      %s201 = scalar_lea.vmem %s3, %s200
      %s202 = smul.u32 %s18, 2
      %s203 = sadd.s32 %s202, %s19
      %p204 = scmp.lt.s32.totalorder %s203, 3
      %s205 = scalar_select %p204, %s203, 3
      %s206 = smul.addr %s205, 30
      %s207 = smul.addr %s206, 4
      %s208 = scalar_lea.vmem %s0, %s207
      %s209 = smul.u32 %s18, 2
      %s210 = sadd.s32 %s209, %s19
      %p211 = scmp.lt.s32.totalorder %s18, 1
      %s212 = scalar_select %p211, %s18, 1
      %s213 = smul.addr %s212, 2
      %s214 = scalar_lea.vmem %s2, %s213
      %s215 = smul.u32 16, %s19
      %p216 = scmp.lt.s32.totalorder %s18, 1
      %s217 = scalar_select %p216, %s18, 1
      %p218 = scmp.lt.s32.totalorder %s215, 31
      %s219 = scalar_select %p218, %s215, 31
      %s220 = smul.addr %s217, 32
      %s221 = sadd.s32 %s219, %s220
      %s222 = smul.addr %s221, 4
      %s223 = scalar_lea.vmem %s3, %s222
      %s224 = smul.u32 16, %s19
      %v226 = vld [vmem:[%s208] sm:$0xf]
      %v227 = vld [vmem:[%s208 + $0x4] sm:$0xf]
      %v228 = vld [vmem:[%s208 + $0x8] sm:$0x1]
      %v229 = vld [vmem:[%s208 + $0xc] sm:$0xf]
      %v230 = vld [vmem:[%s208 + $0x10] sm:$0xf]
      %v231 = vld [vmem:[%s208 + $0x14] sm:$0x1]
      %v232 = vld [vmem:[%s208 + $0x18] sm:$0xf]
      %v233 = vld [vmem:[%s208 + $0x1c] sm:$0xf]
      %v234 = vld [vmem:[%s208 + $0x20] sm:$0x1]
      %v235 = vld [vmem:[%s208 + $0x24] sm:$0xf]
      %v236 = vld [vmem:[%s208 + $0x28] sm:$0xf]
      %v237 = vld [vmem:[%s208 + $0x2c] sm:$0x1]
      %v238 = vld [vmem:[%s208 + $0x30] sm:$0xf]
      %v239 = vld [vmem:[%s208 + $0x34] sm:$0xf]
      %v240 = vld [vmem:[%s208 + $0x38] sm:$0x1]
      %v241 = vld [vmem:[%s208 + $0x3c] sm:$0xf]
      %v242 = vld [vmem:[%s208 + $0x40] sm:$0xf]
      %v243 = vld [vmem:[%s208 + $0x44] sm:$0x1]
      %v244 = vld [vmem:[%s208 + $0x48] sm:$0xf]
      %v245 = vld [vmem:[%s208 + $0x4c] sm:$0xf]
      %v246 = vld [vmem:[%s208 + $0x50] sm:$0x1]
      %v247 = vld [vmem:[%s208 + $0x54] sm:$0xf]
      %v248 = vld [vmem:[%s208 + $0x58] sm:$0xf]
      %v249 = vld [vmem:[%s208 + $0x5c] sm:$0x1]
      %v250 = vld [vmem:[%s208 + $0x60] sm:$0xf]
      %v251 = vld [vmem:[%s208 + $0x64] sm:$0xf]
      %v252 = vld [vmem:[%s208 + $0x68] sm:$0x1]
      %v253 = vld [vmem:[%s208 + $0x6c] sm:$0xf]
      %v254 = vld [vmem:[%s208 + $0x70] sm:$0xf]
      %v255 = vld [vmem:[%s208 + $0x74] sm:$0x1]
      %vm256 = vsmask.f32 3328
      %vm257 = vsmask.f32 7440
      %vm258 = vmor %vm256, %vm257
      %v260 = vshrl.u32 %v226, 16
      %v262 = vrot.slane %v260, 4
      %v263 = vshll.u32 %v226, 16
      %v265 = vrot.slane %v263, 5
      %v266 = vor.u32 %v262, %v265
      %v267 = vrot.slane %v266, 4
      %v269 = vshll.u32 %v227, 16
      %v271 = vrot.slane %v269, 5
      %v272 = vsel %vm258, %v267, %v271
      %v273 = vshrl.u32 %v227, 16
      %v275 = vrot.slane %v273, 4
      %v276 = vor.u32 %v275, %v271
      %v277 = vrot.slane %v276, 4
      %v279 = vshll.u32 %v228, 16
      %v281 = vrot.slane %v279, 5
      %v282 = vsel %vm258, %v277, %v281
      %v284 = vshrl.u32 %v229, 16
      %v286 = vrot.slane %v284, 4
      %v287 = vshll.u32 %v229, 16
      %v289 = vrot.slane %v287, 5
      %v290 = vor.u32 %v286, %v289
      %v291 = vrot.slane %v290, 4
      %v293 = vshll.u32 %v230, 16
      %v295 = vrot.slane %v293, 5
      %v296 = vsel %vm258, %v291, %v295
      %v297 = vshrl.u32 %v230, 16
      %v299 = vrot.slane %v297, 4
      %v300 = vor.u32 %v299, %v295
      %v301 = vrot.slane %v300, 4
      %v303 = vshll.u32 %v231, 16
      %v305 = vrot.slane %v303, 5
      %v306 = vsel %vm258, %v301, %v305
      %v308 = vshrl.u32 %v232, 16
      %v310 = vrot.slane %v308, 4
      %v311 = vshll.u32 %v232, 16
      %v313 = vrot.slane %v311, 5
      %v314 = vor.u32 %v310, %v313
      %v315 = vrot.slane %v314, 4
      %v317 = vshll.u32 %v233, 16
      %v319 = vrot.slane %v317, 5
      %v320 = vsel %vm258, %v315, %v319
      %v321 = vshrl.u32 %v233, 16
      %v323 = vrot.slane %v321, 4
      %v324 = vor.u32 %v323, %v319
      %v325 = vrot.slane %v324, 4
      %v327 = vshll.u32 %v234, 16
      %v329 = vrot.slane %v327, 5
      %v330 = vsel %vm258, %v325, %v329
      %v332 = vshrl.u32 %v235, 16
      %v334 = vrot.slane %v332, 4
      %v335 = vshll.u32 %v235, 16
      %v337 = vrot.slane %v335, 5
      %v338 = vor.u32 %v334, %v337
      %v339 = vrot.slane %v338, 4
      %v341 = vshll.u32 %v236, 16
      %v343 = vrot.slane %v341, 5
      %v344 = vsel %vm258, %v339, %v343
      %v345 = vshrl.u32 %v236, 16
      %v347 = vrot.slane %v345, 4
      %v348 = vor.u32 %v347, %v343
      %v349 = vrot.slane %v348, 4
      %v351 = vshll.u32 %v237, 16
      %v353 = vrot.slane %v351, 5
      %v354 = vsel %vm258, %v349, %v353
      %v356 = vshrl.u32 %v238, 16
      %v358 = vrot.slane %v356, 4
      %v359 = vshll.u32 %v238, 16
      %v361 = vrot.slane %v359, 5
      %v362 = vor.u32 %v358, %v361
      %v363 = vrot.slane %v362, 4
      %v365 = vshll.u32 %v239, 16
      %v367 = vrot.slane %v365, 5
      %v368 = vsel %vm258, %v363, %v367
      %v369 = vshrl.u32 %v239, 16
      %v371 = vrot.slane %v369, 4
      %v372 = vor.u32 %v371, %v367
      %v373 = vrot.slane %v372, 4
      %v375 = vshll.u32 %v240, 16
      %v377 = vrot.slane %v375, 5
      %v378 = vsel %vm258, %v373, %v377
      %v380 = vshrl.u32 %v241, 16
      %v382 = vrot.slane %v380, 4
      %v383 = vshll.u32 %v241, 16
      %v385 = vrot.slane %v383, 5
      %v386 = vor.u32 %v382, %v385
      %v387 = vrot.slane %v386, 4
      %v389 = vshll.u32 %v242, 16
      %v391 = vrot.slane %v389, 5
      %v392 = vsel %vm258, %v387, %v391
      %v393 = vshrl.u32 %v242, 16
      %v395 = vrot.slane %v393, 4
      %v396 = vor.u32 %v395, %v391
      %v397 = vrot.slane %v396, 4
      %v399 = vshll.u32 %v243, 16
      %v401 = vrot.slane %v399, 5
      %v402 = vsel %vm258, %v397, %v401
      %v404 = vshrl.u32 %v244, 16
      %v406 = vrot.slane %v404, 4
      %v407 = vshll.u32 %v244, 16
      %v409 = vrot.slane %v407, 5
      %v410 = vor.u32 %v406, %v409
      %v411 = vrot.slane %v410, 4
      %v413 = vshll.u32 %v245, 16
      %v415 = vrot.slane %v413, 5
      %v416 = vsel %vm258, %v411, %v415
      %v417 = vshrl.u32 %v245, 16
      %v419 = vrot.slane %v417, 4
      %v420 = vor.u32 %v419, %v415
      %v421 = vrot.slane %v420, 4
      %v423 = vshll.u32 %v246, 16
      %v425 = vrot.slane %v423, 5
      %v426 = vsel %vm258, %v421, %v425
      %v428 = vshrl.u32 %v247, 16
      %v430 = vrot.slane %v428, 4
      %v431 = vshll.u32 %v247, 16
      %v433 = vrot.slane %v431, 5
      %v434 = vor.u32 %v430, %v433
      %v435 = vrot.slane %v434, 4
      %v437 = vshll.u32 %v248, 16
      %v439 = vrot.slane %v437, 5
      %v440 = vsel %vm258, %v435, %v439
      %v441 = vshrl.u32 %v248, 16
      %v443 = vrot.slane %v441, 4
      %v444 = vor.u32 %v443, %v439
      %v445 = vrot.slane %v444, 4
      %v447 = vshll.u32 %v249, 16
      %v449 = vrot.slane %v447, 5
      %v450 = vsel %vm258, %v445, %v449
      %vm475 = vcmask 1042432
      %vm476 = vcmask 1046532
      %vm477 = vmor %vm475, %vm476
      %v478 = vrot.slane %v226, 5
      %v479 = vrot.slane %v478, 4
      %v480 = vrot.slane %v227, 5
      %v481 = vsel %vm477, %v479, %v480
      %v482 = vrot.slane %v480, 4
      %v483 = vrot.slane %v228, 5
      %v484 = vsel %vm477, %v482, %v483
      %v485 = vrot.slane %v229, 5
      %v486 = vrot.slane %v485, 4
      %v487 = vrot.slane %v230, 5
      %v488 = vsel %vm477, %v486, %v487
      %v489 = vrot.slane %v487, 4
      %v490 = vrot.slane %v231, 5
      %v491 = vsel %vm477, %v489, %v490
      %v492 = vrot.slane %v232, 5
      %v493 = vrot.slane %v492, 4
      %v494 = vrot.slane %v233, 5
      %v495 = vsel %vm477, %v493, %v494
      %v496 = vrot.slane %v494, 4
      %v497 = vrot.slane %v234, 5
      %v498 = vsel %vm477, %v496, %v497
      %v499 = vrot.slane %v235, 5
      %v500 = vrot.slane %v499, 4
      %v501 = vrot.slane %v236, 5
      %v502 = vsel %vm477, %v500, %v501
      %v503 = vrot.slane %v501, 4
      %v504 = vrot.slane %v237, 5
      %v505 = vsel %vm477, %v503, %v504
      %v506 = vrot.slane %v238, 5
      %v507 = vrot.slane %v506, 4
      %v508 = vrot.slane %v239, 5
      %v509 = vsel %vm477, %v507, %v508
      %v510 = vrot.slane %v508, 4
      %v511 = vrot.slane %v240, 5
      %v512 = vsel %vm477, %v510, %v511
      %v513 = vrot.slane %v241, 5
      %v514 = vrot.slane %v513, 4
      %v515 = vrot.slane %v242, 5
      %v516 = vsel %vm477, %v514, %v515
      %v517 = vrot.slane %v515, 4
      %v518 = vrot.slane %v243, 5
      %v519 = vsel %vm477, %v517, %v518
      %v520 = vrot.slane %v244, 5
      %v521 = vrot.slane %v520, 4
      %v522 = vrot.slane %v245, 5
      %v523 = vsel %vm477, %v521, %v522
      %v524 = vrot.slane %v522, 4
      %v525 = vrot.slane %v246, 5
      %v526 = vsel %vm477, %v524, %v525
      %v527 = vrot.slane %v247, 5
      %v528 = vrot.slane %v527, 4
      %v529 = vrot.slane %v248, 5
      %v530 = vsel %vm477, %v528, %v529
      %v531 = vrot.slane %v529, 4
      %v532 = vrot.slane %v249, 5
      %v533 = vsel %vm477, %v531, %v532
      %v534 = vunpack.c.l.b16 %v226
      %v535 = vunpack.c.l.b16 %v227
      %v536 = vunpack.c.l.b16 %v229
      %v537 = vunpack.c.l.b16 %v230
      %v538 = vunpack.c.l.b16 %v232
      %v539 = vunpack.c.l.b16 %v233
      %v540 = vunpack.c.l.b16 %v235
      %v541 = vunpack.c.l.b16 %v236
      %v542 = vunpack.c.l.b16 %v238
      %v543 = vunpack.c.l.b16 %v239
      %v544 = vunpack.c.l.b16 %v241
      %v545 = vunpack.c.l.b16 %v242
      %v546 = vunpack.c.l.b16 %v244
      %v547 = vunpack.c.l.b16 %v245
      %v548 = vunpack.c.l.b16 %v247
      %v549 = vunpack.c.l.b16 %v248
      %v550 = vpack.c.b16 %v535, %v534
      %v551 = vpack.c.b16 %v537, %v536
      %v552 = vpack.c.b16 %v539, %v538
      %v553 = vpack.c.b16 %v541, %v540
      %v554 = vpack.c.b16 %v543, %v542
      %v555 = vpack.c.b16 %v545, %v544
      %v556 = vpack.c.b16 %v547, %v546
      %v557 = vpack.c.b16 %v549, %v548
      %v558 = vunpack.c.l.b16 %v272
      %v559 = vunpack.c.l.b16 %v282
      %v560 = vunpack.c.l.b16 %v296
      %v561 = vunpack.c.l.b16 %v306
      %v562 = vunpack.c.l.b16 %v320
      %v563 = vunpack.c.l.b16 %v330
      %v564 = vunpack.c.l.b16 %v344
      %v565 = vunpack.c.l.b16 %v354
      %v566 = vunpack.c.l.b16 %v368
      %v567 = vunpack.c.l.b16 %v378
      %v568 = vunpack.c.l.b16 %v392
      %v569 = vunpack.c.l.b16 %v402
      %v570 = vunpack.c.l.b16 %v416
      %v571 = vunpack.c.l.b16 %v426
      %v572 = vunpack.c.l.b16 %v440
      %v573 = vunpack.c.l.b16 %v450
      %v574 = vpack.c.b16 %v559, %v558
      %v575 = vpack.c.b16 %v561, %v560
      %v576 = vpack.c.b16 %v563, %v562
      %v577 = vpack.c.b16 %v565, %v564
      %v578 = vpack.c.b16 %v567, %v566
      %v579 = vpack.c.b16 %v569, %v568
      %v580 = vpack.c.b16 %v571, %v570
      %v581 = vpack.c.b16 %v573, %v572
      %582 = vrot.lane.b32.xlu0 %v574, 4
      %v583 = vpop.permute.xlu0 %582
      %584 = vrot.lane.b32.xlu0 %v575, 4
      %v585 = vpop.permute.xlu0 %584
      %586 = vrot.lane.b32.xlu0 %v576, 4
      %v587 = vpop.permute.xlu0 %586
      %588 = vrot.lane.b32.xlu0 %v577, 4
      %v589 = vpop.permute.xlu0 %588
      %590 = vrot.lane.b32.xlu0 %v578, 4
      %v591 = vpop.permute.xlu0 %590
      %592 = vrot.lane.b32.xlu0 %v579, 4
      %v593 = vpop.permute.xlu0 %592
      %594 = vrot.lane.b32.xlu0 %v580, 4
      %v595 = vpop.permute.xlu0 %594
      %596 = vrot.lane.b32.xlu0 %v581, 4
      %v597 = vpop.permute.xlu0 %596
      %v598 = vunpack.c.l.b16 %v481
      %v599 = vunpack.c.l.b16 %v484
      %v600 = vunpack.c.l.b16 %v488
      %v601 = vunpack.c.l.b16 %v491
      %v602 = vunpack.c.l.b16 %v495
      %v603 = vunpack.c.l.b16 %v498
      %v604 = vunpack.c.l.b16 %v502
      %v605 = vunpack.c.l.b16 %v505
      %v606 = vunpack.c.l.b16 %v509
      %v607 = vunpack.c.l.b16 %v512
      %v608 = vunpack.c.l.b16 %v516
      %v609 = vunpack.c.l.b16 %v519
      %v610 = vunpack.c.l.b16 %v523
      %v611 = vunpack.c.l.b16 %v526
      %v612 = vunpack.c.l.b16 %v530
      %v613 = vunpack.c.l.b16 %v533
      %v614 = vpack.c.b16 %v599, %v598
      %v615 = vpack.c.b16 %v601, %v600
      %v616 = vpack.c.b16 %v603, %v602
      %v617 = vpack.c.b16 %v605, %v604
      %v618 = vpack.c.b16 %v607, %v606
      %v619 = vpack.c.b16 %v609, %v608
      %v620 = vpack.c.b16 %v611, %v610
      %v621 = vpack.c.b16 %v613, %v612
      %622 = vrot.lane.b32.xlu0 %v614, 8
      %v623 = vpop.permute.xlu0 %622
      %624 = vrot.lane.b32.xlu0 %v615, 8
      %v625 = vpop.permute.xlu0 %624
      %626 = vrot.lane.b32.xlu0 %v616, 8
      %v627 = vpop.permute.xlu0 %626
      %628 = vrot.lane.b32.xlu0 %v617, 8
      %v629 = vpop.permute.xlu0 %628
      %630 = vrot.lane.b32.xlu0 %v618, 8
      %v631 = vpop.permute.xlu0 %630
      %632 = vrot.lane.b32.xlu0 %v619, 8
      %v633 = vpop.permute.xlu0 %632
      %634 = vrot.lane.b32.xlu0 %v620, 8
      %v635 = vpop.permute.xlu0 %634
      %636 = vrot.lane.b32.xlu0 %v621, 8
      %v637 = vpop.permute.xlu0 %636
      %vm638 = vcmask 31744
      %v641 = vsel %vm638, %v550, %v583
      %v644 = vsel %vm638, %v551, %v585
      %v647 = vsel %vm638, %v552, %v587
      %v650 = vsel %vm638, %v553, %v589
      %v653 = vsel %vm638, %v554, %v591
      %v656 = vsel %vm638, %v555, %v593
      %v659 = vsel %vm638, %v556, %v595
      %v662 = vsel %vm638, %v557, %v597
      %vm663 = vcmask 64512
      %v665 = vsel %vm663, %v641, %v623
      %v667 = vsel %vm663, %v644, %v625
      %v669 = vsel %vm663, %v647, %v627
      %v671 = vsel %vm663, %v650, %v629
      %v673 = vsel %vm663, %v653, %v631
      %v675 = vsel %vm663, %v656, %v633
      %v677 = vsel %vm663, %v659, %v635
      %v679 = vsel %vm663, %v662, %v637
      %v680 = vld [vmem:[%s1] sm:$0xf]
      %v681 = vld [vmem:[%s1 + $0x4] sm:$0x3]
      %v683 = vshrl.u32 %v250, 16
      %v685 = vrot.slane %v683, 4
      %v686 = vshll.u32 %v250, 16
      %v688 = vrot.slane %v686, 5
      %v689 = vor.u32 %v685, %v688
      %v690 = vrot.slane %v689, 4
      %v692 = vshll.u32 %v251, 16
      %v694 = vrot.slane %v692, 5
      %v695 = vsel %vm258, %v690, %v694
      %v696 = vshrl.u32 %v251, 16
      %v698 = vrot.slane %v696, 4
      %v699 = vor.u32 %v698, %v694
      %v700 = vrot.slane %v699, 4
      %v702 = vshll.u32 %v252, 16
      %v704 = vrot.slane %v702, 5
      %v705 = vsel %vm258, %v700, %v704
      %v709 = vrot.slane %v250, 5
      %v710 = vrot.slane %v709, 4
      %v711 = vrot.slane %v251, 5
      %v712 = vsel %vm477, %v710, %v711
      %v713 = vrot.slane %v711, 4
      %v714 = vrot.slane %v252, 5
      %v715 = vsel %vm477, %v713, %v714
      %v716 = vunpack.c.l.b16 %v250
      %v717 = vunpack.c.l.b16 %v251
      %v718 = vpack.c.b16 %v717, %v716
      %v719 = vunpack.c.l.b16 %v695
      %v720 = vunpack.c.l.b16 %v705
      %v721 = vpack.c.b16 %v720, %v719
      %722 = vrot.lane.b32.xlu0 %v721, 4
      %v723 = vpop.permute.xlu0 %722
      %v724 = vunpack.c.l.b16 %v712
      %v725 = vunpack.c.l.b16 %v715
      %v726 = vpack.c.b16 %v725, %v724
      %727 = vrot.lane.b32.xlu0 %v726, 8
      %v728 = vpop.permute.xlu0 %727
      %v731 = vsel %vm638, %v718, %v723
      %v733 = vsel %vm663, %v731, %v728
      %s734 = scalar_lea.vmem %s1, 8
      %v735 = vld [vmem:[%s734] sm:$0xf]
      %v736 = vld [vmem:[%s734 + $0x4] sm:$0x3]
      %v739 = vunpack.c.l.b16 %v735
      %v740 = vunpack.c.l.b16 %v736
      %v741 = vpack.c.b16 %v740, %v739
      %vm742 = vcmask 97280
      %v743 = vsel %vm742, %v667, 0
      %v745 = vsel %vm742, %v669, 0
      %v747 = vsel %vm742, %v671, 0
      %v749 = vsel %vm742, %v673, 0
      %v751 = vsel %vm742, %v675, 0
      %v753 = vsel %vm742, %v677, 0
      %v755 = vsel %vm742, %v679, 0
      %v757 = vsel %vm742, %v733, 0
      %vm759 = vcmask 1045504
      %v761 = vsel %vm759, %v741, 0
      %763 = vmatpush.bf16.msra.mxu0 0
      %764 = vmatpush.bf16.msra.mxu0 0
      %765 = vmatpush.bf16.msra.mxu0 0
      %766 = vmatpush.bf16.msra.mxu0 0
      %767 = vmatpush.bf16.msra.mxu0 0
      %768 = vmatpush.bf16.msra.mxu0 0
      %769 = vmatpush.bf16.msra.mxu0 0
      %770 = vmatpush.bf16.msra.mxu0 %v761
      %771 = vmatmul.bf16.gmra.mxu0 %v743
      %v772 = vpop.f32.mrf.mxu0
      %v773 = vadd.f32 0.0, %v772
      %v774 = vpop.f32.mrf.mxu0
      %v775 = vadd.f32 0.0, %v774
      %776 = vmatmul.bf16.gmra.mxu0 %v745
      %v777 = vpop.f32.mrf.mxu0
      %v778 = vadd.f32 0.0, %v777
      %v779 = vpop.f32.mrf.mxu0
      %v780 = vadd.f32 0.0, %v779
      %781 = vmatmul.bf16.gmra.mxu0 %v747
      %v782 = vpop.f32.mrf.mxu0
      %v783 = vadd.f32 0.0, %v782
      %v784 = vpop.f32.mrf.mxu0
      %v785 = vadd.f32 0.0, %v784
      %786 = vmatmul.bf16.gmra.mxu0 %v749
      %v787 = vpop.f32.mrf.mxu0
      %v788 = vadd.f32 0.0, %v787
      %v789 = vpop.f32.mrf.mxu0
      %v790 = vadd.f32 0.0, %v789
      %791 = vmatmul.bf16.gmra.mxu0 %v751
      %v792 = vpop.f32.mrf.mxu0
      %v793 = vadd.f32 0.0, %v792
      %v794 = vpop.f32.mrf.mxu0
      %v795 = vadd.f32 0.0, %v794
      %796 = vmatmul.bf16.gmra.mxu0 %v753
      %v797 = vpop.f32.mrf.mxu0
      %v798 = vadd.f32 0.0, %v797
      %v799 = vpop.f32.mrf.mxu0
      %v800 = vadd.f32 0.0, %v799
      %801 = vmatmul.bf16.gmra.mxu0 %v755
      %v802 = vpop.f32.mrf.mxu0
      %v803 = vadd.f32 0.0, %v802
      %v804 = vpop.f32.mrf.mxu0
      %v805 = vadd.f32 0.0, %v804
      %806 = vmatmul.bf16.gmra.mxu0 %v757
      %v807 = vpop.f32.mrf.mxu0
      %v808 = vadd.f32 0.0, %v807
      %v809 = vpop.f32.mrf.mxu0
      %v810 = vadd.f32 0.0, %v809
      %811 = vdwg.mxu0
      %v814 = vunpack.c.l.b16 %v680
      %v815 = vunpack.c.l.b16 %v681
      %v816 = vpack.c.b16 %v815, %v814
      %v817 = vsel %vm742, %v665, 0
      %v820 = vsel %vm759, %v816, 0
      %822 = vmatpush.bf16.msra.mxu0 0
      %823 = vmatpush.bf16.msra.mxu0 0
      %824 = vmatpush.bf16.msra.mxu0 0
      %825 = vmatpush.bf16.msra.mxu0 0
      %826 = vmatpush.bf16.msra.mxu0 0
      %827 = vmatpush.bf16.msra.mxu0 0
      %828 = vmatpush.bf16.msra.mxu0 0
      %829 = vmatpush.bf16.msra.mxu0 %v820
      %830 = vmatmul.bf16.gmra.mxu0 %v817
      %v831 = vpop.f32.mrf.mxu0
      %v832 = vadd.f32 %v773, %v831
      %v833 = vpop.f32.mrf.mxu0
      %v834 = vadd.f32 %v775, %v833
      %835 = vmatmul.bf16.gmra.mxu0 %v743
      %v836 = vpop.f32.mrf.mxu0
      %v837 = vadd.f32 %v778, %v836
      %v838 = vpop.f32.mrf.mxu0
      %v839 = vadd.f32 %v780, %v838
      %840 = vmatmul.bf16.gmra.mxu0 %v745
      %v841 = vpop.f32.mrf.mxu0
      %v842 = vadd.f32 %v783, %v841
      %v843 = vpop.f32.mrf.mxu0
      %v844 = vadd.f32 %v785, %v843
      %845 = vmatmul.bf16.gmra.mxu0 %v747
      %v846 = vpop.f32.mrf.mxu0
      %v847 = vadd.f32 %v788, %v846
      %v848 = vpop.f32.mrf.mxu0
      %v849 = vadd.f32 %v790, %v848
      %850 = vmatmul.bf16.gmra.mxu0 %v749
      %v851 = vpop.f32.mrf.mxu0
      %v852 = vadd.f32 %v793, %v851
      %v853 = vpop.f32.mrf.mxu0
      %v854 = vadd.f32 %v795, %v853
      %855 = vmatmul.bf16.gmra.mxu0 %v751
      %v856 = vpop.f32.mrf.mxu0
      %v857 = vadd.f32 %v798, %v856
      %v858 = vpop.f32.mrf.mxu0
      %v859 = vadd.f32 %v800, %v858
      %860 = vmatmul.bf16.gmra.mxu0 %v753
      %v861 = vpop.f32.mrf.mxu0
      %v862 = vadd.f32 %v803, %v861
      %v863 = vpop.f32.mrf.mxu0
      %v864 = vadd.f32 %v805, %v863
      %865 = vmatmul.bf16.gmra.mxu0 %v755
      %v866 = vpop.f32.mrf.mxu0
      %v867 = vadd.f32 %v808, %v866
      %v868 = vpop.f32.mrf.mxu0
      %v869 = vadd.f32 %v810, %v868
      %870 = vdwg.mxu0
      %v872 = vshrl.u32 %v253, 16
      %v874 = vrot.slane %v872, 4
      %v875 = vshll.u32 %v253, 16
      %v877 = vrot.slane %v875, 5
      %v878 = vor.u32 %v874, %v877
      %v879 = vrot.slane %v878, 4
      %v881 = vshll.u32 %v254, 16
      %v883 = vrot.slane %v881, 5
      %v884 = vsel %vm258, %v879, %v883
      %v885 = vshrl.u32 %v254, 16
      %v887 = vrot.slane %v885, 4
      %v888 = vor.u32 %v887, %v883
      %v889 = vrot.slane %v888, 4
      %v891 = vshll.u32 %v255, 16
      %v893 = vrot.slane %v891, 5
      %v894 = vsel %vm258, %v889, %v893
      %v898 = vrot.slane %v253, 5
      %v899 = vrot.slane %v898, 4
      %v900 = vrot.slane %v254, 5
      %v901 = vsel %vm477, %v899, %v900
      %v902 = vrot.slane %v900, 4
      %v903 = vrot.slane %v255, 5
      %v904 = vsel %vm477, %v902, %v903
      %v905 = vunpack.c.l.b16 %v253
      %v906 = vunpack.c.l.b16 %v254
      %v907 = vpack.c.b16 %v906, %v905
      %v908 = vunpack.c.l.b16 %v884
      %v909 = vunpack.c.l.b16 %v894
      %v910 = vpack.c.b16 %v909, %v908
      %911 = vrot.lane.b32.xlu0 %v910, 4
      %v912 = vpop.permute.xlu0 %911
      %v913 = vunpack.c.l.b16 %v901
      %v914 = vunpack.c.l.b16 %v904
      %v915 = vpack.c.b16 %v914, %v913
      %916 = vrot.lane.b32.xlu0 %v915, 8
      %v917 = vpop.permute.xlu0 %916
      %v920 = vsel %vm638, %v907, %v912
      %v922 = vsel %vm663, %v920, %v917
      %s923 = scalar_lea.vmem %s1, 16
      %v924 = vld [vmem:[%s923] sm:$0xf]
      %v925 = vld [vmem:[%s923 + $0x4] sm:$0x3]
      %v928 = vunpack.c.l.b16 %v924
      %v929 = vunpack.c.l.b16 %v925
      %v930 = vpack.c.b16 %v929, %v928
      %v931 = vsel %vm742, %v922, 0
      %v934 = vsel %vm759, %v930, 0
      %936 = vmatpush.bf16.msra.mxu0 0
      %937 = vmatpush.bf16.msra.mxu0 0
      %938 = vmatpush.bf16.msra.mxu0 0
      %939 = vmatpush.bf16.msra.mxu0 0
      %940 = vmatpush.bf16.msra.mxu0 0
      %941 = vmatpush.bf16.msra.mxu0 0
      %942 = vmatpush.bf16.msra.mxu0 0
      %943 = vmatpush.bf16.msra.mxu0 %v934
      %944 = vmatmul.bf16.gmra.mxu0 %v745
      %v945 = vpop.f32.mrf.mxu0
      %v946 = vadd.f32 0.0, %v945
      %v947 = vpop.f32.mrf.mxu0
      %v948 = vadd.f32 0.0, %v947
      %949 = vmatmul.bf16.gmra.mxu0 %v747
      %v950 = vpop.f32.mrf.mxu0
      %v951 = vadd.f32 0.0, %v950
      %v952 = vpop.f32.mrf.mxu0
      %v953 = vadd.f32 0.0, %v952
      %954 = vmatmul.bf16.gmra.mxu0 %v749
      %v955 = vpop.f32.mrf.mxu0
      %v956 = vadd.f32 0.0, %v955
      %v957 = vpop.f32.mrf.mxu0
      %v958 = vadd.f32 0.0, %v957
      %959 = vmatmul.bf16.gmra.mxu0 %v751
      %v960 = vpop.f32.mrf.mxu0
      %v961 = vadd.f32 0.0, %v960
      %v962 = vpop.f32.mrf.mxu0
      %v963 = vadd.f32 0.0, %v962
      %964 = vmatmul.bf16.gmra.mxu0 %v753
      %v965 = vpop.f32.mrf.mxu0
      %v966 = vadd.f32 0.0, %v965
      %v967 = vpop.f32.mrf.mxu0
      %v968 = vadd.f32 0.0, %v967
      %969 = vmatmul.bf16.gmra.mxu0 %v755
      %v970 = vpop.f32.mrf.mxu0
      %v971 = vadd.f32 0.0, %v970
      %v972 = vpop.f32.mrf.mxu0
      %v973 = vadd.f32 0.0, %v972
      %974 = vmatmul.bf16.gmra.mxu0 %v757
      %v975 = vpop.f32.mrf.mxu0
      %v976 = vadd.f32 0.0, %v975
      %v977 = vpop.f32.mrf.mxu0
      %v978 = vadd.f32 0.0, %v977
      %979 = vmatmul.bf16.gmra.mxu0 %v931
      %v980 = vpop.f32.mrf.mxu0
      %v981 = vadd.f32 0.0, %v980
      %v982 = vpop.f32.mrf.mxu0
      %v983 = vadd.f32 0.0, %v982
      %984 = vdwg.mxu0
      %v985 = vadd.f32 %v832, %v946
      %v986 = vadd.f32 %v834, %v948
      %v987 = vadd.f32 %v837, %v951
      %v988 = vadd.f32 %v839, %v953
      %v989 = vadd.f32 %v842, %v956
      %v990 = vadd.f32 %v844, %v958
      %v991 = vadd.f32 %v847, %v961
      %v992 = vadd.f32 %v849, %v963
      %v993 = vadd.f32 %v852, %v966
      %v994 = vadd.f32 %v854, %v968
      %v995 = vadd.f32 %v857, %v971
      %v996 = vadd.f32 %v859, %v973
      %v997 = vadd.f32 %v862, %v976
      %v998 = vadd.f32 %v864, %v978
      %v999 = vadd.f32 %v867, %v981
      %v1000 = vadd.f32 %v869, %v983
      %v1001 = vld [vmem:[%s214 + $0x1] sm:$0x1]
      %v1002 = vld [vmem:[%s214] sm:$0x1]
      %v1003 = vperm.slane %v1002, 0
      %v1004 = vmul.f32 %v985, %v1003
      %v1005 = vmul.f32 %v986, %v1003
      %v1006 = vmul.f32 %v987, %v1003
      %v1007 = vmul.f32 %v988, %v1003
      %v1008 = vmul.f32 %v989, %v1003
      %v1009 = vmul.f32 %v990, %v1003
      %v1010 = vmul.f32 %v991, %v1003
      %v1011 = vmul.f32 %v992, %v1003
      %v1012 = vmul.f32 %v993, %v1003
      %v1013 = vmul.f32 %v994, %v1003
      %v1014 = vmul.f32 %v995, %v1003
      %v1015 = vmul.f32 %v996, %v1003
      %v1016 = vmul.f32 %v997, %v1003
      %v1017 = vmul.f32 %v998, %v1003
      %v1018 = vmul.f32 %v999, %v1003
      %v1019 = vmul.f32 %v1000, %v1003
      %v1020 = vperm.slane %v1001, 0
      %v1021 = vadd.f32 %v1004, %v1020
      %v1022 = vadd.f32 %v1005, %v1020
      %v1023 = vadd.f32 %v1006, %v1020
      %v1024 = vadd.f32 %v1007, %v1020
      %v1025 = vadd.f32 %v1008, %v1020
      %v1026 = vadd.f32 %v1009, %v1020
      %v1027 = vadd.f32 %v1010, %v1020
      %v1028 = vadd.f32 %v1011, %v1020
      %v1029 = vadd.f32 %v1012, %v1020
      %v1030 = vadd.f32 %v1013, %v1020
      %v1031 = vadd.f32 %v1014, %v1020
      %v1032 = vadd.f32 %v1015, %v1020
      %v1033 = vadd.f32 %v1016, %v1020
      %v1034 = vadd.f32 %v1017, %v1020
      %v1035 = vadd.f32 %v1018, %v1020
      %v1036 = vadd.f32 %v1019, %v1020
      %v1037 = vxor.u32 %v1021, 2147483648
      %v1038 = vxor.u32 %v1022, 2147483648
      %v1039 = vxor.u32 %v1023, 2147483648
      %v1040 = vxor.u32 %v1024, 2147483648
      %v1041 = vxor.u32 %v1025, 2147483648
      %v1042 = vxor.u32 %v1026, 2147483648
      %v1043 = vxor.u32 %v1027, 2147483648
      %v1044 = vxor.u32 %v1028, 2147483648
      %v1045 = vxor.u32 %v1029, 2147483648
      %v1046 = vxor.u32 %v1030, 2147483648
      %v1047 = vxor.u32 %v1031, 2147483648
      %v1048 = vxor.u32 %v1032, 2147483648
      %v1049 = vxor.u32 %v1033, 2147483648
      %v1050 = vxor.u32 %v1034, 2147483648
      %v1051 = vxor.u32 %v1035, 2147483648
      %v1052 = vxor.u32 %v1036, 2147483648
      %v1053 = vmul.f32 %v1037, 1.442695
      %v1054 = vpow.pop %v1053
      %v1055 = vmul.f32 %v1038, 1.442695
      %v1056 = vpow.pop %v1055
      %v1057 = vmul.f32 %v1039, 1.442695
      %v1058 = vpow.pop %v1057
      %v1059 = vmul.f32 %v1040, 1.442695
      %v1060 = vpow.pop %v1059
      %v1061 = vmul.f32 %v1041, 1.442695
      %v1062 = vpow.pop %v1061
      %v1063 = vmul.f32 %v1042, 1.442695
      %v1064 = vpow.pop %v1063
      %v1065 = vmul.f32 %v1043, 1.442695
      %v1066 = vpow.pop %v1065
      %v1067 = vmul.f32 %v1044, 1.442695
      %v1068 = vpow.pop %v1067
      %v1069 = vmul.f32 %v1045, 1.442695
      %v1070 = vpow.pop %v1069
      %v1071 = vmul.f32 %v1046, 1.442695
      %v1072 = vpow.pop %v1071
      %v1073 = vmul.f32 %v1047, 1.442695
      %v1074 = vpow.pop %v1073
      %v1075 = vmul.f32 %v1048, 1.442695
      %v1076 = vpow.pop %v1075
      %v1077 = vmul.f32 %v1049, 1.442695
      %v1078 = vpow.pop %v1077
      %v1079 = vmul.f32 %v1050, 1.442695
      %v1080 = vpow.pop %v1079
      %v1081 = vmul.f32 %v1051, 1.442695
      %v1082 = vpow.pop %v1081
      %v1083 = vmul.f32 %v1052, 1.442695
      %v1084 = vpow.pop %v1083
      %v1085 = vadd.f32 %v1054, 1.0
      %v1086 = vadd.f32 %v1056, 1.0
      %v1087 = vadd.f32 %v1058, 1.0
      %v1088 = vadd.f32 %v1060, 1.0
      %v1089 = vadd.f32 %v1062, 1.0
      %v1090 = vadd.f32 %v1064, 1.0
      %v1091 = vadd.f32 %v1066, 1.0
      %v1092 = vadd.f32 %v1068, 1.0
      %v1093 = vadd.f32 %v1070, 1.0
      %v1094 = vadd.f32 %v1072, 1.0
      %v1095 = vadd.f32 %v1074, 1.0
      %v1096 = vadd.f32 %v1076, 1.0
      %v1097 = vadd.f32 %v1078, 1.0
      %v1098 = vadd.f32 %v1080, 1.0
      %v1099 = vadd.f32 %v1082, 1.0
      %v1100 = vadd.f32 %v1084, 1.0
      %v1101 = vrcp.pop %v1085
      %v1102 = vmul.f32 %v1085, %v1101
      %v1103 = vsub.f32 1.0, %v1102
      %v1104 = vmul.f32 %v1101, %v1103
      %v1105 = vadd.f32 %v1101, %v1104
      %vm1106 = vweird.f32 %v1085
      %vm1107 = vweird.f32 %v1101
      %vm1108 = vmor %vm1106, %vm1107
      %v1109 = vsel %vm1108, %v1101, %v1105
      %v1110 = vand.u32 2147483647, %v1085
      %vm1111 = vcmp.eq.f32.partialorder %v1110, 8.507059e+37
      %v1112 = vand.u32 %v1085, 2147483648
      %v1113 = vor.u32 1.1754944e-38, %v1112
      %v1114 = vsel %vm1111, %v1113, %v1109
      %v1115 = vmul.f32 1.0, %v1114
      %v1116 = vrcp.pop %v1086
      %v1117 = vmul.f32 %v1086, %v1116
      %v1118 = vsub.f32 1.0, %v1117
      %v1119 = vmul.f32 %v1116, %v1118
      %v1120 = vadd.f32 %v1116, %v1119
      %vm1121 = vweird.f32 %v1086
      %vm1122 = vweird.f32 %v1116
      %vm1123 = vmor %vm1121, %vm1122
      %v1124 = vsel %vm1123, %v1116, %v1120
      %v1125 = vand.u32 2147483647, %v1086
      %vm1126 = vcmp.eq.f32.partialorder %v1125, 8.507059e+37
      %v1127 = vand.u32 %v1086, 2147483648
      %v1128 = vor.u32 1.1754944e-38, %v1127
      %v1129 = vsel %vm1126, %v1128, %v1124
      %v1130 = vmul.f32 1.0, %v1129
      %v1131 = vrcp.pop %v1087
      %v1132 = vmul.f32 %v1087, %v1131
      %v1133 = vsub.f32 1.0, %v1132
      %v1134 = vmul.f32 %v1131, %v1133
      %v1135 = vadd.f32 %v1131, %v1134
      %vm1136 = vweird.f32 %v1087
      %vm1137 = vweird.f32 %v1131
      %vm1138 = vmor %vm1136, %vm1137
      %v1139 = vsel %vm1138, %v1131, %v1135
      %v1140 = vand.u32 2147483647, %v1087
      %vm1141 = vcmp.eq.f32.partialorder %v1140, 8.507059e+37
      %v1142 = vand.u32 %v1087, 2147483648
      %v1143 = vor.u32 1.1754944e-38, %v1142
      %v1144 = vsel %vm1141, %v1143, %v1139
      %v1145 = vmul.f32 1.0, %v1144
      %v1146 = vrcp.pop %v1088
      %v1147 = vmul.f32 %v1088, %v1146
      %v1148 = vsub.f32 1.0, %v1147
      %v1149 = vmul.f32 %v1146, %v1148
      %v1150 = vadd.f32 %v1146, %v1149
      %vm1151 = vweird.f32 %v1088
      %vm1152 = vweird.f32 %v1146
      %vm1153 = vmor %vm1151, %vm1152
      %v1154 = vsel %vm1153, %v1146, %v1150
      %v1155 = vand.u32 2147483647, %v1088
      %vm1156 = vcmp.eq.f32.partialorder %v1155, 8.507059e+37
      %v1157 = vand.u32 %v1088, 2147483648
      %v1158 = vor.u32 1.1754944e-38, %v1157
      %v1159 = vsel %vm1156, %v1158, %v1154
      %v1160 = vmul.f32 1.0, %v1159
      %v1161 = vrcp.pop %v1089
      %v1162 = vmul.f32 %v1089, %v1161
      %v1163 = vsub.f32 1.0, %v1162
      %v1164 = vmul.f32 %v1161, %v1163
      %v1165 = vadd.f32 %v1161, %v1164
      %vm1166 = vweird.f32 %v1089
      %vm1167 = vweird.f32 %v1161
      %vm1168 = vmor %vm1166, %vm1167
      %v1169 = vsel %vm1168, %v1161, %v1165
      %v1170 = vand.u32 2147483647, %v1089
      %vm1171 = vcmp.eq.f32.partialorder %v1170, 8.507059e+37
      %v1172 = vand.u32 %v1089, 2147483648
      %v1173 = vor.u32 1.1754944e-38, %v1172
      %v1174 = vsel %vm1171, %v1173, %v1169
      %v1175 = vmul.f32 1.0, %v1174
      %v1176 = vrcp.pop %v1090
      %v1177 = vmul.f32 %v1090, %v1176
      %v1178 = vsub.f32 1.0, %v1177
      %v1179 = vmul.f32 %v1176, %v1178
      %v1180 = vadd.f32 %v1176, %v1179
      %vm1181 = vweird.f32 %v1090
      %vm1182 = vweird.f32 %v1176
      %vm1183 = vmor %vm1181, %vm1182
      %v1184 = vsel %vm1183, %v1176, %v1180
      %v1185 = vand.u32 2147483647, %v1090
      %vm1186 = vcmp.eq.f32.partialorder %v1185, 8.507059e+37
      %v1187 = vand.u32 %v1090, 2147483648
      %v1188 = vor.u32 1.1754944e-38, %v1187
      %v1189 = vsel %vm1186, %v1188, %v1184
      %v1190 = vmul.f32 1.0, %v1189
      %v1191 = vrcp.pop %v1091
      %v1192 = vmul.f32 %v1091, %v1191
      %v1193 = vsub.f32 1.0, %v1192
      %v1194 = vmul.f32 %v1191, %v1193
      %v1195 = vadd.f32 %v1191, %v1194
      %vm1196 = vweird.f32 %v1091
      %vm1197 = vweird.f32 %v1191
      %vm1198 = vmor %vm1196, %vm1197
      %v1199 = vsel %vm1198, %v1191, %v1195
      %v1200 = vand.u32 2147483647, %v1091
      %vm1201 = vcmp.eq.f32.partialorder %v1200, 8.507059e+37
      %v1202 = vand.u32 %v1091, 2147483648
      %v1203 = vor.u32 1.1754944e-38, %v1202
      %v1204 = vsel %vm1201, %v1203, %v1199
      %v1205 = vmul.f32 1.0, %v1204
      %v1206 = vrcp.pop %v1092
      %v1207 = vmul.f32 %v1092, %v1206
      %v1208 = vsub.f32 1.0, %v1207
      %v1209 = vmul.f32 %v1206, %v1208
      %v1210 = vadd.f32 %v1206, %v1209
      %vm1211 = vweird.f32 %v1092
      %vm1212 = vweird.f32 %v1206
      %vm1213 = vmor %vm1211, %vm1212
      %v1214 = vsel %vm1213, %v1206, %v1210
      %v1215 = vand.u32 2147483647, %v1092
      %vm1216 = vcmp.eq.f32.partialorder %v1215, 8.507059e+37
      %v1217 = vand.u32 %v1092, 2147483648
      %v1218 = vor.u32 1.1754944e-38, %v1217
      %v1219 = vsel %vm1216, %v1218, %v1214
      %v1220 = vmul.f32 1.0, %v1219
      %v1221 = vrcp.pop %v1093
      %v1222 = vmul.f32 %v1093, %v1221
      %v1223 = vsub.f32 1.0, %v1222
      %v1224 = vmul.f32 %v1221, %v1223
      %v1225 = vadd.f32 %v1221, %v1224
      %vm1226 = vweird.f32 %v1093
      %vm1227 = vweird.f32 %v1221
      %vm1228 = vmor %vm1226, %vm1227
      %v1229 = vsel %vm1228, %v1221, %v1225
      %v1230 = vand.u32 2147483647, %v1093
      %vm1231 = vcmp.eq.f32.partialorder %v1230, 8.507059e+37
      %v1232 = vand.u32 %v1093, 2147483648
      %v1233 = vor.u32 1.1754944e-38, %v1232
      %v1234 = vsel %vm1231, %v1233, %v1229
      %v1235 = vmul.f32 1.0, %v1234
      %v1236 = vrcp.pop %v1094
      %v1237 = vmul.f32 %v1094, %v1236
      %v1238 = vsub.f32 1.0, %v1237
      %v1239 = vmul.f32 %v1236, %v1238
      %v1240 = vadd.f32 %v1236, %v1239
      %vm1241 = vweird.f32 %v1094
      %vm1242 = vweird.f32 %v1236
      %vm1243 = vmor %vm1241, %vm1242
      %v1244 = vsel %vm1243, %v1236, %v1240
      %v1245 = vand.u32 2147483647, %v1094
      %vm1246 = vcmp.eq.f32.partialorder %v1245, 8.507059e+37
      %v1247 = vand.u32 %v1094, 2147483648
      %v1248 = vor.u32 1.1754944e-38, %v1247
      %v1249 = vsel %vm1246, %v1248, %v1244
      %v1250 = vmul.f32 1.0, %v1249
      %v1251 = vrcp.pop %v1095
      %v1252 = vmul.f32 %v1095, %v1251
      %v1253 = vsub.f32 1.0, %v1252
      %v1254 = vmul.f32 %v1251, %v1253
      %v1255 = vadd.f32 %v1251, %v1254
      %vm1256 = vweird.f32 %v1095
      %vm1257 = vweird.f32 %v1251
      %vm1258 = vmor %vm1256, %vm1257
      %v1259 = vsel %vm1258, %v1251, %v1255
      %v1260 = vand.u32 2147483647, %v1095
      %vm1261 = vcmp.eq.f32.partialorder %v1260, 8.507059e+37
      %v1262 = vand.u32 %v1095, 2147483648
      %v1263 = vor.u32 1.1754944e-38, %v1262
      %v1264 = vsel %vm1261, %v1263, %v1259
      %v1265 = vmul.f32 1.0, %v1264
      %v1266 = vrcp.pop %v1096
      %v1267 = vmul.f32 %v1096, %v1266
      %v1268 = vsub.f32 1.0, %v1267
      %v1269 = vmul.f32 %v1266, %v1268
      %v1270 = vadd.f32 %v1266, %v1269
      %vm1271 = vweird.f32 %v1096
      %vm1272 = vweird.f32 %v1266
      %vm1273 = vmor %vm1271, %vm1272
      %v1274 = vsel %vm1273, %v1266, %v1270
      %v1275 = vand.u32 2147483647, %v1096
      %vm1276 = vcmp.eq.f32.partialorder %v1275, 8.507059e+37
      %v1277 = vand.u32 %v1096, 2147483648
      %v1278 = vor.u32 1.1754944e-38, %v1277
      %v1279 = vsel %vm1276, %v1278, %v1274
      %v1280 = vmul.f32 1.0, %v1279
      %v1281 = vrcp.pop %v1097
      %v1282 = vmul.f32 %v1097, %v1281
      %v1283 = vsub.f32 1.0, %v1282
      %v1284 = vmul.f32 %v1281, %v1283
      %v1285 = vadd.f32 %v1281, %v1284
      %vm1286 = vweird.f32 %v1097
      %vm1287 = vweird.f32 %v1281
      %vm1288 = vmor %vm1286, %vm1287
      %v1289 = vsel %vm1288, %v1281, %v1285
      %v1290 = vand.u32 2147483647, %v1097
      %vm1291 = vcmp.eq.f32.partialorder %v1290, 8.507059e+37
      %v1292 = vand.u32 %v1097, 2147483648
      %v1293 = vor.u32 1.1754944e-38, %v1292
      %v1294 = vsel %vm1291, %v1293, %v1289
      %v1295 = vmul.f32 1.0, %v1294
      %v1296 = vrcp.pop %v1098
      %v1297 = vmul.f32 %v1098, %v1296
      %v1298 = vsub.f32 1.0, %v1297
      %v1299 = vmul.f32 %v1296, %v1298
      %v1300 = vadd.f32 %v1296, %v1299
      %vm1301 = vweird.f32 %v1098
      %vm1302 = vweird.f32 %v1296
      %vm1303 = vmor %vm1301, %vm1302
      %v1304 = vsel %vm1303, %v1296, %v1300
      %v1305 = vand.u32 2147483647, %v1098
      %vm1306 = vcmp.eq.f32.partialorder %v1305, 8.507059e+37
      %v1307 = vand.u32 %v1098, 2147483648
      %v1308 = vor.u32 1.1754944e-38, %v1307
      %v1309 = vsel %vm1306, %v1308, %v1304
      %v1310 = vmul.f32 1.0, %v1309
      %v1311 = vrcp.pop %v1099
      %v1312 = vmul.f32 %v1099, %v1311
      %v1313 = vsub.f32 1.0, %v1312
      %v1314 = vmul.f32 %v1311, %v1313
      %v1315 = vadd.f32 %v1311, %v1314
      %vm1316 = vweird.f32 %v1099
      %vm1317 = vweird.f32 %v1311
      %vm1318 = vmor %vm1316, %vm1317
      %v1319 = vsel %vm1318, %v1311, %v1315
      %v1320 = vand.u32 2147483647, %v1099
      %vm1321 = vcmp.eq.f32.partialorder %v1320, 8.507059e+37
      %v1322 = vand.u32 %v1099, 2147483648
      %v1323 = vor.u32 1.1754944e-38, %v1322
      %v1324 = vsel %vm1321, %v1323, %v1319
      %v1325 = vmul.f32 1.0, %v1324
      %v1326 = vrcp.pop %v1100
      %v1327 = vmul.f32 %v1100, %v1326
      %v1328 = vsub.f32 1.0, %v1327
      %v1329 = vmul.f32 %v1326, %v1328
      %v1330 = vadd.f32 %v1326, %v1329
      %vm1331 = vweird.f32 %v1100
      %vm1332 = vweird.f32 %v1326
      %vm1333 = vmor %vm1331, %vm1332
      %v1334 = vsel %vm1333, %v1326, %v1330
      %v1335 = vand.u32 2147483647, %v1100
      %vm1336 = vcmp.eq.f32.partialorder %v1335, 8.507059e+37
      %v1337 = vand.u32 %v1100, 2147483648
      %v1338 = vor.u32 1.1754944e-38, %v1337
      %v1339 = vsel %vm1336, %v1338, %v1334
      %v1340 = vmul.f32 1.0, %v1339
      %v1341 = vmul.f32 %v1021, %v1115
      %v1342 = vmul.f32 %v1022, %v1130
      %v1343 = vmul.f32 %v1023, %v1145
      %v1344 = vmul.f32 %v1024, %v1160
      %v1345 = vmul.f32 %v1025, %v1175
      %v1346 = vmul.f32 %v1026, %v1190
      %v1347 = vmul.f32 %v1027, %v1205
      %v1348 = vmul.f32 %v1028, %v1220
      %v1349 = vmul.f32 %v1029, %v1235
      %v1350 = vmul.f32 %v1030, %v1250
      %v1351 = vmul.f32 %v1031, %v1265
      %v1352 = vmul.f32 %v1032, %v1280
      %v1353 = vmul.f32 %v1033, %v1295
      %v1354 = vmul.f32 %v1034, %v1310
      %v1355 = vmul.f32 %v1035, %v1325
      %v1356 = vmul.f32 %v1036, %v1340
      %v1357 = vpack.c.bf16 %v1341, %v1341
      %v1358 = vpack.c.bf16 %v1342, %v1342
      %v1359 = vpack.c.bf16 %v1343, %v1343
      %v1360 = vpack.c.bf16 %v1344, %v1344
      %v1361 = vpack.c.bf16 %v1345, %v1345
      %v1362 = vpack.c.bf16 %v1346, %v1346
      %v1363 = vpack.c.bf16 %v1347, %v1347
      %v1364 = vpack.c.bf16 %v1348, %v1348
      %v1365 = vpack.c.bf16 %v1349, %v1349
      %v1366 = vpack.c.bf16 %v1350, %v1350
      %v1367 = vpack.c.bf16 %v1351, %v1351
      %v1368 = vpack.c.bf16 %v1352, %v1352
      %v1369 = vpack.c.bf16 %v1353, %v1353
      %v1370 = vpack.c.bf16 %v1354, %v1354
      %v1371 = vpack.c.bf16 %v1355, %v1355
      %v1372 = vpack.c.bf16 %v1356, %v1356
      %vm1373 = vcmask 60416
      %1374 = vst.msk [vmem:[%s223] sm:$0xf] %vm1373, %v1357
      %1375 = vst.msk [vmem:[%s223 + $0x4] sm:$0xf] %vm1373, %v1358
      %1376 = vst.msk [vmem:[%s223 + $0x8] sm:$0xf] %vm1373, %v1359
      %1377 = vst.msk [vmem:[%s223 + $0xc] sm:$0xf] %vm1373, %v1360
      %1378 = vst.msk [vmem:[%s223 + $0x10] sm:$0xf] %vm1373, %v1361
      %1379 = vst.msk [vmem:[%s223 + $0x14] sm:$0xf] %vm1373, %v1362
      %1380 = vst.msk [vmem:[%s223 + $0x18] sm:$0xf] %vm1373, %v1363
      %1381 = vst.msk [vmem:[%s223 + $0x1c] sm:$0xf] %vm1373, %v1364
      %1382 = vst.msk [vmem:[%s223 + $0x20] sm:$0xf] %vm1373, %v1365
      %1383 = vst.msk [vmem:[%s223 + $0x24] sm:$0xf] %vm1373, %v1366
      %1384 = vst.msk [vmem:[%s223 + $0x28] sm:$0xf] %vm1373, %v1367
      %1385 = vst.msk [vmem:[%s223 + $0x2c] sm:$0xf] %vm1373, %v1368
      %1386 = vst.msk [vmem:[%s223 + $0x30] sm:$0xf] %vm1373, %v1369
      %1387 = vst.msk [vmem:[%s223 + $0x34] sm:$0xf] %vm1373, %v1370
      %1388 = vst.msk [vmem:[%s223 + $0x38] sm:$0xf] %vm1373, %v1371
      %1389 = vst.msk [vmem:[%s223 + $0x3c] sm:$0xf] %vm1373, %v1372
      %s1390 = smul.u32 16, %s19
      %p1391 = scmp.lt.s32.totalorder %s18, 1
      %s1392 = scalar_select %p1391, %s18, 1
      %p1393 = scmp.lt.s32.totalorder %s1390, 31
      %s1394 = scalar_select %p1393, %s1390, 31
      %s1395 = smul.addr %s1392, 32
      %s1396 = sadd.s32 %s1394, %s1395
      %s1397 = smul.addr %s1396, 4
      %s1398 = scalar_lea.vmem %s3, %s1397
      // Predicated region
      $region33: #{block_forward.1} parent=31 // pred_check
        %p1399 = pneg %p123
      $region34: #{block_forward.1} parent=31 // pred_check_branch
        %1401 = sbr.rel (%p1399) target = $region36
      $region35: #{block_forward.1} parent=31 // pred_region
        %s1402 = smul.u32 16, %s19
      $region36: #{block_forward.1} parent=31 // pred_fallthru
        _
    $region32: #{block_forward.1} parent=5 // pred_fallthru
      _
    %p1403 = scmp.le.s32.totalorder 2, %s9
    // Predicated region
    $region37: #{block_forward.1} parent=5 // pred_check
      %p1404 = pneg %p1403
    $region38: #{block_forward.1} parent=5 // pred_check_branch
      %1406 = sbr.rel (%p1404) target = $region40
    $region39: #{block_forward.1} parent=5 // pred_region
      %s1407 = ssub.s32 %s9, 2
      // Predicated region
      $region41: #{block_forward.1} parent=39 // pred_check
        %p1408 = pneg %p129
      $region42: #{block_forward.1} parent=39 // pred_check_branch
        %1410 = sbr.rel (%p1408) target = $region44
      $region43: #{block_forward.1} parent=39 // pred_region
        %s1411 = smul.u32 16, %s21
        %p1412 = scmp.lt.s32.totalorder %s20, 1
        %s1413 = scalar_select %p1412, %s20, 1
        %p1414 = scmp.lt.s32.totalorder %s1411, 31
        %s1415 = scalar_select %p1414, %s1411, 31
        %s1416 = smul.addr %s1413, 32
        %s1417 = sadd.s32 %s1415, %s1416
        %s1418 = smul.addr %s1417, 4
        %s1419 = scalar_lea.vmem %s3, %s1418
      $region44: #{block_forward.1} parent=39 // pred_fallthru
        _
    $region40: #{block_forward.1} parent=5 // pred_fallthru
      _
  $region6: #{block_forward.1} parent=0 // loop_footer
    %s13 = sadd.s32 1, %s9
  $region7: #{block_forward.1} parent=0 // loop_footer_branch
    %8 = sbr.rel target = $region3
  $region8: #{block_forward.1} parent=0 // loop_exit
    _

</llo_original>
